<compile_context>
chip_gen: v6e
topology: v6e:2x2x1
jax: 0.10.0
libtpu: 0.0.40
codegen_flags: <defaults>
</compile_context>

<pallas_src>
import functools

import jax
import jax.numpy as jnp
from jax.experimental import pallas as pl
from jax.experimental.pallas import tpu as pltpu


def _conv3_kernel(x_ref, mask_ref, w1_ref, b1_ref, w2_ref, b2_ref, out_ref,
                  mid_ref, *, W):
    """Fused Conv3x3 -> (folded BN) -> Conv3x3 -> ReLU for one batch element.

    x_ref   : (1, Cin, HW + 2P)  flat input with zero halo of P = W+1 per side
    mask_ref: (2, 1, HW)         column-validity masks for dx = -1 and dx = +1
    w1_ref  : (Cout, 9*Cin)      conv1 taps with BN scale folded in
    b1_ref  : (Cout, 1)          conv1 bias with BN shift folded in
    w2_ref  : (Cout, 9*Cout)     conv2 taps
    b2_ref  : (Cout, 1)
    out_ref : (1, Cout, HW)
    mid_ref : VMEM scratch (Cout, HW + 2P) holding conv1 output + zero halo
    """
    Cout = out_ref.shape[1]
    HW = out_ref.shape[2]
    P = W + 1

    m_left = mask_ref[0]    # (1, HW): tap reads column w-1 -> valid iff w >= 1
    m_right = mask_ref[1]   # (1, HW): tap reads column w+1 -> valid iff w <= W-2

    def im2col(load_window):
        # Gather the 9 shifted (C, HW) windows (tap order t = ky*3+kx) from a
        # flat halo-padded ref and stack them along sublanes -> (9*C, HW).
        cols = []
        for dy in (-1, 0, 1):
            for dx in (-1, 0, 1):
                win = load_window(P + dy * W + dx)
                if dx == -1:
                    win = win * m_left
                elif dx == 1:
                    win = win * m_right
                cols.append(win)
        return jnp.concatenate(cols, axis=0)

    # ---- conv1 + folded BatchNorm: a single K = 9*Cin MXU matmul ----
    im1 = im2col(lambda s: x_ref[0, :, pl.ds(s, HW)])            # (9*Cin, HW)
    mid = jnp.dot(w1_ref[...], im1,
                  preferred_element_type=jnp.float32) + b1_ref[...]

    # Stash conv1/BN output in the flat halo-padded scratch for conv2's taps.
    mid_ref[:, :P] = jnp.zeros((Cout, P), jnp.float32)
    mid_ref[:, P + HW:] = jnp.zeros((Cout, P), jnp.float32)
    mid_ref[:, pl.ds(P, HW)] = mid

    # ---- conv2: a single K = 9*Cout MXU matmul, then bias + ReLU ----
    im2 = im2col(lambda s: mid_ref[:, pl.ds(s, HW)])             # (9*Cout, HW)
    y = jnp.dot(w2_ref[...], im2,
                preferred_element_type=jnp.float32) + b2_ref[...]

    out_ref[0] = jnp.maximum(y, 0.0).astype(out_ref.dtype)


@jax.jit
def conv3_forward(x_nchw, w1_pt, b1, gamma, beta, rmean, rvar, w2_pt, b2,
                  eps=1e-5):
    """x_nchw: (N, Cin, H, W) f32; PyTorch-layout params. Returns NCHW f32."""
    N, Cin, H, W = x_nchw.shape
    Cout = w1_pt.shape[0]
    HW = H * W
    P = W + 1

    # ---- fold eval-mode BatchNorm into conv1 (scale -> weights, shift -> bias) ----
    scale = gamma / jnp.sqrt(rvar + eps)                          # (Cout,)
    w1f = w1_pt * scale[:, None, None, None]                      # (Cout, Cin, 3, 3)
    b1f = scale * (b1 - rmean) + beta                             # (Cout,)

    # ---- weights as dense 2-D slabs: w[co, (ky*3+kx)*C + ci] = w_pt[co, ci, ky, kx]
    w1k = jnp.transpose(w1f, (0, 2, 3, 1)).reshape(Cout, 9 * Cin)
    w2k = jnp.transpose(w2_pt, (0, 2, 3, 1)).reshape(Cout, 9 * Cout)
    b1k = b1f.reshape(Cout, 1)
    b2k = b2.reshape(Cout, 1)

    # ---- flat spatial layout (C on sublanes, H*W on lanes) + zero halo of W+1 ----
    x_flat = x_nchw.reshape(N, Cin, HW)
    x_pad = jnp.pad(x_flat, ((0, 0), (0, 0), (P, P)))             # (N, Cin, HW+2P)

    # Column-validity masks (row boundaries are handled by the zero halo).
    col = jnp.arange(HW, dtype=jnp.int32) % W
    masks = jnp.stack([(col >= 1).astype(jnp.float32),            # dx = -1
                       (col <= W - 2).astype(jnp.float32)])       # dx = +1
    masks = masks.reshape(2, 1, HW)

    kernel = functools.partial(_conv3_kernel, W=W)
    out_flat = pl.pallas_call(
        kernel,
        out_shape=jax.ShapeDtypeStruct((N, Cout, HW), x_nchw.dtype),
        grid=(N,),
        in_specs=[
            pl.BlockSpec((1, Cin, HW + 2 * P), lambda n: (n, 0, 0)),
            pl.BlockSpec((2, 1, HW), lambda n: (0, 0, 0)),
            pl.BlockSpec((Cout, 9 * Cin), lambda n: (0, 0)),
            pl.BlockSpec((Cout, 1), lambda n: (0, 0)),
            pl.BlockSpec((Cout, 9 * Cout), lambda n: (0, 0)),
            pl.BlockSpec((Cout, 1), lambda n: (0, 0)),
        ],
        out_specs=pl.BlockSpec((1, Cout, HW), lambda n: (n, 0, 0)),
        scratch_shapes=[pltpu.VMEM((Cout, HW + 2 * P), jnp.float32)],
        compiler_params=pltpu.CompilerParams(
            dimension_semantics=("parallel",)),
    )(x_pad, masks, w1k, b1k, w2k, b2k)

    return out_flat.reshape(N, Cout, H, W)


def _reference_nchw(x, w1, b1, gamma, beta, rmean, rvar, w2, b2, eps=1e-5):
    """Plain-JAX NCHW reference (high precision) for validation."""
    dn = jax.lax.conv_dimension_numbers(x.shape, w1.shape,
                                        ("NCHW", "OIHW", "NCHW"))
    y = jax.lax.conv_general_dilated(
        x, w1, (1, 1), "SAME", dimension_numbers=dn,
        precision=jax.lax.Precision.HIGHEST) + b1[None, :, None, None]
    y = ((y - rmean[None, :, None, None])
         / jnp.sqrt(rvar[None, :, None, None] + eps)
         * gamma[None, :, None, None] + beta[None, :, None, None])
    y = jax.lax.conv_general_dilated(
        y, w2, (1, 1), "SAME", dimension_numbers=dn,
        precision=jax.lax.Precision.HIGHEST) + b2[None, :, None, None]
    return jnp.maximum(y, 0.0)


if __name__ == "__main__":
    key = jax.random.PRNGKey(0)
    N, C, H, W = 2, 8, 16, 16   # module requires in_ch == out_ch to be well-formed
    keys = jax.random.split(key, 9)

    x = jax.random.normal(keys[0], (N, C, H, W), jnp.float32)
    w1 = 0.1 * jax.random.normal(keys[1], (C, C, 3, 3), jnp.float32)
    b1 = 0.1 * jax.random.normal(keys[2], (C,), jnp.float32)
    gamma = 1.0 + 0.05 * jax.random.normal(keys[3], (C,), jnp.float32)
    beta = 0.05 * jax.random.normal(keys[4], (C,), jnp.float32)
    rmean = 0.05 * jax.random.normal(keys[5], (C,), jnp.float32)
    rvar = jnp.abs(1.0 + 0.05 * jax.random.normal(keys[6], (C,), jnp.float32))
    w2 = 0.1 * jax.random.normal(keys[7], (C, C, 3, 3), jnp.float32)
    b2 = 0.1 * jax.random.normal(keys[8], (C,), jnp.float32)

    out = conv3_forward(x, w1, b1, gamma, beta, rmean, rvar, w2, b2)
    out = jax.block_until_ready(out)

    ref = _reference_nchw(x, w1, b1, gamma, beta, rmean, rvar, w2, b2)
    assert out.shape == (N, C, H, W)
    assert jnp.allclose(out, ref, atol=1e-3, rtol=1e-3), (
        f"mismatch vs JAX reference: max |err| = {jnp.max(jnp.abs(out - ref))}")

    print("KERNEL_OK")
</pallas_src>

<mosaic_0001>
module attributes {stable_mosaic.version = 11 : i64} {
  func.func @_conv3_kernel(%arg0: i32, %arg1: memref<1x8x290xf32, #tpu.memory_space<vmem>>, %arg2: memref<2x1x256xf32, #tpu.memory_space<vmem>>, %arg3: memref<8x72xf32, #tpu.memory_space<vmem>>, %arg4: memref<8x1xf32, #tpu.memory_space<vmem>>, %arg5: memref<8x72xf32, #tpu.memory_space<vmem>>, %arg6: memref<8x1xf32, #tpu.memory_space<vmem>>, %arg7: memref<1x8x256xf32, #tpu.memory_space<vmem>>, %arg8: memref<8x290xf32, #tpu.memory_space<vmem>>) attributes {dimension_semantics = [#tpu.dimension_semantics<parallel>], iteration_bounds = array<i64: 2>, scalar_prefetch = 0 : i64, scratch_operands = 1 : i64, tpu.core_type = #tpu.core_type<tc>, window_params = [{transform_indices = @transform_0, window_bounds = array<i64: 1, 8, 290>}, {pipeline_mode = #tpu.pipeline_mode<synchronous>, transform_indices = @transform_1, window_bounds = array<i64: 2, 1, 256>}, {pipeline_mode = #tpu.pipeline_mode<synchronous>, transform_indices = @transform_2, window_bounds = array<i64: 8, 72>}, {pipeline_mode = #tpu.pipeline_mode<synchronous>, transform_indices = @transform_3, window_bounds = array<i64: 8, 1>}, {pipeline_mode = #tpu.pipeline_mode<synchronous>, transform_indices = @transform_4, window_bounds = array<i64: 8, 72>}, {pipeline_mode = #tpu.pipeline_mode<synchronous>, transform_indices = @transform_5, window_bounds = array<i64: 8, 1>}, {transform_indices = @transform_6, window_bounds = array<i64: 1, 8, 256>}]} {
    %c0 = arith.constant 0 : index
    %c0_0 = arith.constant 0 : index
    %c0_1 = arith.constant 0 : index
    %0 = vector.load %arg2[%c0, %c0_0, %c0_1] : memref<2x1x256xf32, #tpu.memory_space<vmem>>, vector<1x1x256xf32>
    %1 = vector.shape_cast %0 : vector<1x1x256xf32> to vector<1x256xf32>
    %c1 = arith.constant 1 : index
    %c0_2 = arith.constant 0 : index
    %c0_3 = arith.constant 0 : index
    %2 = vector.load %arg2[%c1, %c0_2, %c0_3] : memref<2x1x256xf32, #tpu.memory_space<vmem>>, vector<1x1x256xf32>
    %3 = vector.shape_cast %2 : vector<1x1x256xf32> to vector<1x256xf32>
    %c0_4 = arith.constant 0 : index
    %c0_5 = arith.constant 0 : index
    %c0_6 = arith.constant 0 : index
    %4 = vector.load %arg1[%c0_4, %c0_5, %c0_6] : memref<1x8x290xf32, #tpu.memory_space<vmem>>, vector<1x8x256xf32>
    %5 = vector.shape_cast %4 : vector<1x8x256xf32> to vector<8x256xf32>
    %6 = vector.broadcast %1 : vector<1x256xf32> to vector<8x256xf32>
    %7 = arith.mulf %5, %6 : vector<8x256xf32>
    %c0_7 = arith.constant 0 : index
    %c0_8 = arith.constant 0 : index
    %c1_9 = arith.constant 1 : index
    %8 = vector.load %arg1[%c0_7, %c0_8, %c1_9] : memref<1x8x290xf32, #tpu.memory_space<vmem>>, vector<1x8x256xf32>
    %9 = vector.shape_cast %8 : vector<1x8x256xf32> to vector<8x256xf32>
    %c0_10 = arith.constant 0 : index
    %c0_11 = arith.constant 0 : index
    %c2 = arith.constant 2 : index
    %10 = vector.load %arg1[%c0_10, %c0_11, %c2] : memref<1x8x290xf32, #tpu.memory_space<vmem>>, vector<1x8x256xf32>
    %11 = vector.shape_cast %10 : vector<1x8x256xf32> to vector<8x256xf32>
    %12 = vector.broadcast %3 : vector<1x256xf32> to vector<8x256xf32>
    %13 = arith.mulf %11, %12 : vector<8x256xf32>
    %c0_12 = arith.constant 0 : index
    %c0_13 = arith.constant 0 : index
    %c16 = arith.constant 16 : index
    %14 = vector.load %arg1[%c0_12, %c0_13, %c16] : memref<1x8x290xf32, #tpu.memory_space<vmem>>, vector<1x8x256xf32>
    %15 = vector.shape_cast %14 : vector<1x8x256xf32> to vector<8x256xf32>
    %16 = vector.broadcast %1 : vector<1x256xf32> to vector<8x256xf32>
    %17 = arith.mulf %15, %16 : vector<8x256xf32>
    %c0_14 = arith.constant 0 : index
    %c0_15 = arith.constant 0 : index
    %c17 = arith.constant 17 : index
    %18 = vector.load %arg1[%c0_14, %c0_15, %c17] : memref<1x8x290xf32, #tpu.memory_space<vmem>>, vector<1x8x256xf32>
    %19 = vector.shape_cast %18 : vector<1x8x256xf32> to vector<8x256xf32>
    %c0_16 = arith.constant 0 : index
    %c0_17 = arith.constant 0 : index
    %c18 = arith.constant 18 : index
    %20 = vector.load %arg1[%c0_16, %c0_17, %c18] : memref<1x8x290xf32, #tpu.memory_space<vmem>>, vector<1x8x256xf32>
    %21 = vector.shape_cast %20 : vector<1x8x256xf32> to vector<8x256xf32>
    %22 = vector.broadcast %3 : vector<1x256xf32> to vector<8x256xf32>
    %23 = arith.mulf %21, %22 : vector<8x256xf32>
    %c0_18 = arith.constant 0 : index
    %c0_19 = arith.constant 0 : index
    %c32 = arith.constant 32 : index
    %24 = vector.load %arg1[%c0_18, %c0_19, %c32] : memref<1x8x290xf32, #tpu.memory_space<vmem>>, vector<1x8x256xf32>
    %25 = vector.shape_cast %24 : vector<1x8x256xf32> to vector<8x256xf32>
    %26 = vector.broadcast %1 : vector<1x256xf32> to vector<8x256xf32>
    %27 = arith.mulf %25, %26 : vector<8x256xf32>
    %c0_20 = arith.constant 0 : index
    %c0_21 = arith.constant 0 : index
    %c33 = arith.constant 33 : index
    %28 = vector.load %arg1[%c0_20, %c0_21, %c33] : memref<1x8x290xf32, #tpu.memory_space<vmem>>, vector<1x8x256xf32>
    %29 = vector.shape_cast %28 : vector<1x8x256xf32> to vector<8x256xf32>
    %c0_22 = arith.constant 0 : index
    %c0_23 = arith.constant 0 : index
    %c34 = arith.constant 34 : index
    %30 = vector.load %arg1[%c0_22, %c0_23, %c34] : memref<1x8x290xf32, #tpu.memory_space<vmem>>, vector<1x8x256xf32>
    %31 = vector.shape_cast %30 : vector<1x8x256xf32> to vector<8x256xf32>
    %32 = vector.broadcast %3 : vector<1x256xf32> to vector<8x256xf32>
    %33 = arith.mulf %31, %32 : vector<8x256xf32>
    %34 = tpu.concatenate %7, %9, %13, %17, %19, %23, %27, %29, %33 in 0 : vector<8x256xf32>, vector<8x256xf32>, vector<8x256xf32>, vector<8x256xf32>, vector<8x256xf32>, vector<8x256xf32>, vector<8x256xf32>, vector<8x256xf32>, vector<8x256xf32> -> vector<72x256xf32>
    %c0_24 = arith.constant 0 : index
    %c0_25 = arith.constant 0 : index
    %35 = vector.load %arg3[%c0_24, %c0_25] : memref<8x72xf32, #tpu.memory_space<vmem>>, vector<8x72xf32>
    %cst = arith.constant dense<0.000000e+00> : vector<8x256xf32>
    %36 = tpu.matmul %35, %34, %cst {dimension_numbers = #tpu.dot_dimension_numbers<[1], [0], [0], [1], [0, 0, 1, 1], [], []>} : vector<8x72xf32>, vector<72x256xf32>, vector<8x256xf32> -> vector<8x256xf32>
    %c0_26 = arith.constant 0 : index
    %c0_27 = arith.constant 0 : index
    %37 = vector.load %arg4[%c0_26, %c0_27] : memref<8x1xf32, #tpu.memory_space<vmem>>, vector<8x1xf32>
    %38 = vector.broadcast %37 : vector<8x1xf32> to vector<8x256xf32>
    %39 = arith.addf %36, %38 : vector<8x256xf32>
    %cst_28 = arith.constant 0.000000e+00 : f32
    %40 = vector.broadcast %cst_28 : f32 to vector<8x17xf32>
    %c0_29 = arith.constant 0 : index
    %c0_30 = arith.constant 0 : index
    %41 = vector.load %arg8[%c0_29, %c0_30] : memref<8x290xf32, #tpu.memory_space<vmem>>, vector<8x17xf32>
    tpu.vector_store %arg8[%c0_29, %c0_30], %40 {strides = array<i32>} : memref<8x290xf32, #tpu.memory_space<vmem>>, vector<8x17xf32>,
    %cst_31 = arith.constant 0.000000e+00 : f32
    %42 = vector.broadcast %cst_31 : f32 to vector<8x17xf32>
    %c0_32 = arith.constant 0 : index
    %c273 = arith.constant 273 : index
    %43 = vector.load %arg8[%c0_32, %c273] : memref<8x290xf32, #tpu.memory_space<vmem>>, vector<8x17xf32>
    tpu.vector_store %arg8[%c0_32, %c273], %42 {strides = array<i32>} : memref<8x290xf32, #tpu.memory_space<vmem>>, vector<8x17xf32>,
    %c0_33 = arith.constant 0 : index
    %c17_34 = arith.constant 17 : index
    %44 = vector.load %arg8[%c0_33, %c17_34] : memref<8x290xf32, #tpu.memory_space<vmem>>, vector<8x256xf32>
    tpu.vector_store %arg8[%c0_33, %c17_34], %39 {strides = array<i32>} : memref<8x290xf32, #tpu.memory_space<vmem>>, vector<8x256xf32>,
    %c0_35 = arith.constant 0 : index
    %c0_36 = arith.constant 0 : index
    %45 = vector.load %arg8[%c0_35, %c0_36] : memref<8x290xf32, #tpu.memory_space<vmem>>, vector<8x256xf32>
    %46 = vector.broadcast %1 : vector<1x256xf32> to vector<8x256xf32>
    %47 = arith.mulf %45, %46 : vector<8x256xf32>
    %c0_37 = arith.constant 0 : index
    %c1_38 = arith.constant 1 : index
    %48 = vector.load %arg8[%c0_37, %c1_38] : memref<8x290xf32, #tpu.memory_space<vmem>>, vector<8x256xf32>
    %c0_39 = arith.constant 0 : index
    %c2_40 = arith.constant 2 : index
    %49 = vector.load %arg8[%c0_39, %c2_40] : memref<8x290xf32, #tpu.memory_space<vmem>>, vector<8x256xf32>
    %50 = vector.broadcast %3 : vector<1x256xf32> to vector<8x256xf32>
    %51 = arith.mulf %49, %50 : vector<8x256xf32>
    %c0_41 = arith.constant 0 : index
    %c16_42 = arith.constant 16 : index
    %52 = vector.load %arg8[%c0_41, %c16_42] : memref<8x290xf32, #tpu.memory_space<vmem>>, vector<8x256xf32>
    %53 = vector.broadcast %1 : vector<1x256xf32> to vector<8x256xf32>
    %54 = arith.mulf %52, %53 : vector<8x256xf32>
    %c0_43 = arith.constant 0 : index
    %c17_44 = arith.constant 17 : index
    %55 = vector.load %arg8[%c0_43, %c17_44] : memref<8x290xf32, #tpu.memory_space<vmem>>, vector<8x256xf32>
    %c0_45 = arith.constant 0 : index
    %c18_46 = arith.constant 18 : index
    %56 = vector.load %arg8[%c0_45, %c18_46] : memref<8x290xf32, #tpu.memory_space<vmem>>, vector<8x256xf32>
    %57 = vector.broadcast %3 : vector<1x256xf32> to vector<8x256xf32>
    %58 = arith.mulf %56, %57 : vector<8x256xf32>
    %c0_47 = arith.constant 0 : index
    %c32_48 = arith.constant 32 : index
    %59 = vector.load %arg8[%c0_47, %c32_48] : memref<8x290xf32, #tpu.memory_space<vmem>>, vector<8x256xf32>
    %60 = vector.broadcast %1 : vector<1x256xf32> to vector<8x256xf32>
    %61 = arith.mulf %59, %60 : vector<8x256xf32>
    %c0_49 = arith.constant 0 : index
    %c33_50 = arith.constant 33 : index
    %62 = vector.load %arg8[%c0_49, %c33_50] : memref<8x290xf32, #tpu.memory_space<vmem>>, vector<8x256xf32>
    %c0_51 = arith.constant 0 : index
    %c34_52 = arith.constant 34 : index
    %63 = vector.load %arg8[%c0_51, %c34_52] : memref<8x290xf32, #tpu.memory_space<vmem>>, vector<8x256xf32>
    %64 = vector.broadcast %3 : vector<1x256xf32> to vector<8x256xf32>
    %65 = arith.mulf %63, %64 : vector<8x256xf32>
    %66 = tpu.concatenate %47, %48, %51, %54, %55, %58, %61, %62, %65 in 0 : vector<8x256xf32>, vector<8x256xf32>, vector<8x256xf32>, vector<8x256xf32>, vector<8x256xf32>, vector<8x256xf32>, vector<8x256xf32>, vector<8x256xf32>, vector<8x256xf32> -> vector<72x256xf32>
    %c0_53 = arith.constant 0 : index
    %c0_54 = arith.constant 0 : index
    %67 = vector.load %arg5[%c0_53, %c0_54] : memref<8x72xf32, #tpu.memory_space<vmem>>, vector<8x72xf32>
    %cst_55 = arith.constant dense<0.000000e+00> : vector<8x256xf32>
    %68 = tpu.matmul %67, %66, %cst_55 {dimension_numbers = #tpu.dot_dimension_numbers<[1], [0], [0], [1], [0, 0, 1, 1], [], []>} : vector<8x72xf32>, vector<72x256xf32>, vector<8x256xf32> -> vector<8x256xf32>
    %c0_56 = arith.constant 0 : index
    %c0_57 = arith.constant 0 : index
    %69 = vector.load %arg6[%c0_56, %c0_57] : memref<8x1xf32, #tpu.memory_space<vmem>>, vector<8x1xf32>
    %70 = vector.broadcast %69 : vector<8x1xf32> to vector<8x256xf32>
    %71 = arith.addf %68, %70 : vector<8x256xf32>
    %cst_58 = arith.constant 0.000000e+00 : f32
    %72 = vector.broadcast %cst_58 : f32 to vector<8x256xf32>
    %73 = arith.maximumf %71, %72 : vector<8x256xf32>
    %c0_59 = arith.constant 0 : index
    %c0_60 = arith.constant 0 : index
    %c0_61 = arith.constant 0 : index
    %74 = vector.load %arg7[%c0_59, %c0_60, %c0_61] : memref<1x8x256xf32, #tpu.memory_space<vmem>>, vector<1x8x256xf32>
    %75 = vector.shape_cast %74 : vector<1x8x256xf32> to vector<8x256xf32>
    %76 = vector.shape_cast %73 : vector<8x256xf32> to vector<1x8x256xf32>
    tpu.vector_store %arg7[%c0_59, %c0_60, %c0_61], %76 {strides = array<i32>} : memref<1x8x256xf32, #tpu.memory_space<vmem>>, vector<1x8x256xf32>,
    return
  }
  func.func @transform_0(%arg0: i32) -> (i32, i32, i32) {
    %c0_i32 = arith.constant 0 : i32
    %c0_i32_0 = arith.constant 0 : i32
    %c0_i32_1 = arith.constant 0 : i32
    return %arg0, %c0_i32, %c0_i32_0 : i32, i32, i32
  }
  func.func @transform_1(%arg0: i32) -> (i32, i32, i32) {
    %c0_i32 = arith.constant 0 : i32
    %c0_i32_0 = arith.constant 0 : i32
    %c0_i32_1 = arith.constant 0 : i32
    %c0_i32_2 = arith.constant 0 : i32
    return %c0_i32, %c0_i32_0, %c0_i32_1 : i32, i32, i32
  }
  func.func @transform_2(%arg0: i32) -> (i32, i32) {
    %c0_i32 = arith.constant 0 : i32
    %c0_i32_0 = arith.constant 0 : i32
    %c0_i32_1 = arith.constant 0 : i32
    return %c0_i32, %c0_i32_0 : i32, i32
  }
  func.func @transform_3(%arg0: i32) -> (i32, i32) {
    %c0_i32 = arith.constant 0 : i32
    %c0_i32_0 = arith.constant 0 : i32
    %c0_i32_1 = arith.constant 0 : i32
    return %c0_i32, %c0_i32_0 : i32, i32
  }
  func.func @transform_4(%arg0: i32) -> (i32, i32) {
    %c0_i32 = arith.constant 0 : i32
    %c0_i32_0 = arith.constant 0 : i32
    %c0_i32_1 = arith.constant 0 : i32
    return %c0_i32, %c0_i32_0 : i32, i32
  }
  func.func @transform_5(%arg0: i32) -> (i32, i32) {
    %c0_i32 = arith.constant 0 : i32
    %c0_i32_0 = arith.constant 0 : i32
    %c0_i32_1 = arith.constant 0 : i32
    return %c0_i32, %c0_i32_0 : i32, i32
  }
  func.func @transform_6(%arg0: i32) -> (i32, i32, i32) {
    %c0_i32 = arith.constant 0 : i32
    %c0_i32_0 = arith.constant 0 : i32
    %c0_i32_1 = arith.constant 0 : i32
    return %arg0, %c0_i32, %c0_i32_0 : i32, i32, i32
  }
}

</mosaic_0001>

<llo_original>
// kernel: conv3_forward.1
$region0: #{conv3_forward.1}
  #allocation0 [shape = 'u32[]', space=smem, size = 0x4, offset = 0x4, fixed_abs, tag = 'smem constant byte address 0x4 - core index']
  #allocation1 [shape = 'u32[144,128]{1,0:T(1,128)}', space=vmem, size = 0x12000, scoped, tag = 'internal scratch']
  #allocation2 [shape = 'f32[8,290]{1,0:T(8,128)}', space=vmem, size = 0x3000, scoped, tag = 'scratch operand']
  %s0 = inlined_call_operand.vmem [shape: f32[2,8,290], index: 0, kind: input, shape index: {}]
  %s1 = inlined_call_operand.vmem [shape: f32[2,1,256], index: 1, kind: input, shape index: {}]
  %s2 = inlined_call_operand.vmem [shape: f32[8,72], index: 2, kind: input, shape index: {}]
  %s3 = inlined_call_operand.vmem [shape: f32[8,1], index: 3, kind: input, shape index: {}]
  %s4 = inlined_call_operand.vmem [shape: f32[8,72], index: 4, kind: input, shape index: {}]
  %s5 = inlined_call_operand.vmem [shape: f32[8,1], index: 5, kind: input, shape index: {}]
  %s6 = inlined_call_operand.vmem [shape: f32[2,8,256], index: 6, kind: output, shape index: {}]
  %s7 = sld [smem:[#allocation0]]
  $region57: #{conv3_forward.1} parent=0
    _
  %s9 = ssub.s32 1, %s7
  %s10 = scalar_select 0, %s9, %s7
  loop: start=0, step=1, limit=4
  $region2: #{conv3_forward.1} parent=0 // loop_pre_header
    _
  $region3: #{conv3_forward.1} parent=0 // loop_header
    %s12 = sphi 0, %s16
    %p13 = scmp.ge.s32.totalorder %s12, 4
    %s22 = sphi 0, %s24
    %s25 = sphi 0, %s22
    %s26 = sphi 0, %s25
    %s42 = sphi 0, %s26
    %s46 = sphi 0, %s46
    %s48 = sphi 0, %s46
    %s49 = sphi 0, %s48
    %s63 = sphi 0, %s49
    %s67 = sphi 0, %s67
    %s69 = sphi 0, %s67
    %s70 = sphi 0, %s69
    %s84 = sphi 0, %s70
    %s88 = sphi 0, %s88
    %s90 = sphi 0, %s88
    %s91 = sphi 0, %s90
    %s105 = sphi 0, %s91
    %s109 = sphi 0, %s109
    %s111 = sphi 0, %s109
    %s112 = sphi 0, %s111
    %s126 = sphi 0, %s112
    %s130 = sphi 0, %s130
    %s132 = sphi 0, %s130
    %s133 = sphi 0, %s132
    %s147 = sphi 0, %s133
    %s153 = sphi 0, %s155
    %s156 = sphi 0, %s153
    %s157 = sphi 0, %s156
    %s173 = sphi 0, %s157
  $region4: #{conv3_forward.1} parent=0 // loop_header_branch
    %15 = sbr.rel (%p13) target = $region8
  $region5: #{conv3_forward.1} parent=0 // loop_body
    %s17 = ssub.s32 %s12, 1
    %s18 = ssub.s32 %s12, 2
    %s19 = sadd.s32 %s12, 1
    %s20 = ssub.s32 %s12, %s19
    %p21 = scmp.eq.s32.totalorder %s20, 0
    %s23 = sadd.s32 %s22, 1
    %s24 = scalar_select %p21, %s22, %s23
    %p27 = pneg %p21
    %p28 = scmp.eq.s32.totalorder %s12, 1
    %p29 = por %p27, %p28
    %p30 = scmp.ne.s32.totalorder %s22, %s25
    %p31 = scmp.eq.s32.totalorder %s12, 0
    %p32 = por %p30, %p31
    %p33 = scmp.ne.s32.totalorder %s22, %s25
    %p34 = scmp.eq.s32.totalorder %s17, 1
    %p35 = por %p33, %p34
    %p36 = scmp.ne.s32.totalorder %s25, %s26
    %p37 = scmp.eq.s32.totalorder %s17, 0
    %p38 = por %p36, %p37
    %p39 = scmp.ne.s32.totalorder %s25, %s26
    %p40 = scmp.eq.s32.totalorder %s18, 1
    %p41 = por %p39, %p40
    %p43 = scmp.ne.s32.totalorder %s26, %s42
    %p44 = scmp.eq.s32.totalorder %s18, 0
    %p45 = por %p43, %p44
    %s47 = sadd.s32 %s46, 1
    %p50 = scmp.eq.s32.totalorder %s12, 1
    %p51 = scmp.ne.s32.totalorder %s46, %s48
    %p52 = scmp.eq.s32.totalorder %s12, 0
    %p53 = por %p51, %p52
    %p54 = scmp.ne.s32.totalorder %s46, %s48
    %p55 = scmp.eq.s32.totalorder %s17, 1
    %p56 = por %p54, %p55
    %p57 = scmp.ne.s32.totalorder %s48, %s49
    %p58 = scmp.eq.s32.totalorder %s17, 0
    %p59 = por %p57, %p58
    %p60 = scmp.ne.s32.totalorder %s48, %s49
    %p61 = scmp.eq.s32.totalorder %s18, 1
    %p62 = por %p60, %p61
    %p64 = scmp.ne.s32.totalorder %s49, %s63
    %p65 = scmp.eq.s32.totalorder %s18, 0
    %p66 = por %p64, %p65
    %s68 = sadd.s32 %s67, 1
    %p71 = scmp.eq.s32.totalorder %s12, 1
    %p72 = scmp.ne.s32.totalorder %s67, %s69
    %p73 = scmp.eq.s32.totalorder %s12, 0
    %p74 = por %p72, %p73
    %p75 = scmp.ne.s32.totalorder %s67, %s69
    %p76 = scmp.eq.s32.totalorder %s17, 1
    %p77 = por %p75, %p76
    %p78 = scmp.ne.s32.totalorder %s69, %s70
    %p79 = scmp.eq.s32.totalorder %s17, 0
    %p80 = por %p78, %p79
    %p81 = scmp.ne.s32.totalorder %s69, %s70
    %p82 = scmp.eq.s32.totalorder %s18, 1
    %p83 = por %p81, %p82
    %p85 = scmp.ne.s32.totalorder %s70, %s84
    %p86 = scmp.eq.s32.totalorder %s18, 0
    %p87 = por %p85, %p86
    %s89 = sadd.s32 %s88, 1
    %p92 = scmp.eq.s32.totalorder %s12, 1
    %p93 = scmp.ne.s32.totalorder %s88, %s90
    %p94 = scmp.eq.s32.totalorder %s12, 0
    %p95 = por %p93, %p94
    %p96 = scmp.ne.s32.totalorder %s88, %s90
    %p97 = scmp.eq.s32.totalorder %s17, 1
    %p98 = por %p96, %p97
    %p99 = scmp.ne.s32.totalorder %s90, %s91
    %p100 = scmp.eq.s32.totalorder %s17, 0
    %p101 = por %p99, %p100
    %p102 = scmp.ne.s32.totalorder %s90, %s91
    %p103 = scmp.eq.s32.totalorder %s18, 1
    %p104 = por %p102, %p103
    %p106 = scmp.ne.s32.totalorder %s91, %s105
    %p107 = scmp.eq.s32.totalorder %s18, 0
    %p108 = por %p106, %p107
    %s110 = sadd.s32 %s109, 1
    %p113 = scmp.eq.s32.totalorder %s12, 1
    %p114 = scmp.ne.s32.totalorder %s109, %s111
    %p115 = scmp.eq.s32.totalorder %s12, 0
    %p116 = por %p114, %p115
    %p117 = scmp.ne.s32.totalorder %s109, %s111
    %p118 = scmp.eq.s32.totalorder %s17, 1
    %p119 = por %p117, %p118
    %p120 = scmp.ne.s32.totalorder %s111, %s112
    %p121 = scmp.eq.s32.totalorder %s17, 0
    %p122 = por %p120, %p121
    %p123 = scmp.ne.s32.totalorder %s111, %s112
    %p124 = scmp.eq.s32.totalorder %s18, 1
    %p125 = por %p123, %p124
    %p127 = scmp.ne.s32.totalorder %s112, %s126
    %p128 = scmp.eq.s32.totalorder %s18, 0
    %p129 = por %p127, %p128
    %s131 = sadd.s32 %s130, 1
    %p134 = scmp.eq.s32.totalorder %s12, 1
    %p135 = scmp.ne.s32.totalorder %s130, %s132
    %p136 = scmp.eq.s32.totalorder %s12, 0
    %p137 = por %p135, %p136
    %p138 = scmp.ne.s32.totalorder %s130, %s132
    %p139 = scmp.eq.s32.totalorder %s17, 1
    %p140 = por %p138, %p139
    %p141 = scmp.ne.s32.totalorder %s132, %s133
    %p142 = scmp.eq.s32.totalorder %s17, 0
    %p143 = por %p141, %p142
    %p144 = scmp.ne.s32.totalorder %s132, %s133
    %p145 = scmp.eq.s32.totalorder %s18, 1
    %p146 = por %p144, %p145
    %p148 = scmp.ne.s32.totalorder %s133, %s147
    %p149 = scmp.eq.s32.totalorder %s18, 0
    %p150 = por %p148, %p149
    %s151 = ssub.s32 %s12, %s19
    %p152 = scmp.eq.s32.totalorder %s151, 0
    %s154 = sadd.s32 %s153, 1
    %s155 = scalar_select %p152, %s153, %s154
    %p158 = pneg %p152
    %p159 = scmp.eq.s32.totalorder %s12, 1
    %p160 = por %p158, %p159
    %p161 = scmp.ne.s32.totalorder %s153, %s156
    %p162 = scmp.eq.s32.totalorder %s12, 0
    %p163 = por %p161, %p162
    %p164 = scmp.ne.s32.totalorder %s153, %s156
    %p165 = scmp.eq.s32.totalorder %s17, 1
    %p166 = por %p164, %p165
    %p167 = scmp.ne.s32.totalorder %s156, %s157
    %p168 = scmp.eq.s32.totalorder %s17, 0
    %p169 = por %p167, %p168
    %p170 = scmp.ne.s32.totalorder %s156, %s157
    %p171 = scmp.eq.s32.totalorder %s18, 1
    %p172 = por %p170, %p171
    %p174 = scmp.ne.s32.totalorder %s157, %s173
    %p175 = scmp.eq.s32.totalorder %s18, 0
    %p176 = por %p174, %p175
    %p177 = scmp.le.s32.totalorder 1, %s12
    %p178 = scmp.lt.s32.totalorder %s12, 3
    %p179 = pnand %p177, %p178
    %p180 = pneg %p179
    // Predicated region
    $region9: #{conv3_forward.1} parent=5 // pred_check
      _
    $region10: #{conv3_forward.1} parent=5 // pred_check_branch
      %182 = sbr.rel (%p179) target = $region12
    $region11: #{conv3_forward.1} parent=5 // pred_region
      %s183 = ssub.s32 %s12, 1
      // Predicated region
      $region13: #{conv3_forward.1} parent=11 // pred_check
        %p184 = pneg %p59
      $region14: #{conv3_forward.1} parent=11 // pred_check_branch
        %186 = sbr.rel (%p184) target = $region16
      $region15: #{conv3_forward.1} parent=11 // pred_region
        _
      $region16: #{conv3_forward.1} parent=11 // pred_fallthru
        _
      // Predicated region
      $region17: #{conv3_forward.1} parent=11 // pred_check
        %p187 = pneg %p80
      $region18: #{conv3_forward.1} parent=11 // pred_check_branch
        %189 = sbr.rel (%p187) target = $region20
      $region19: #{conv3_forward.1} parent=11 // pred_region
        _
      $region20: #{conv3_forward.1} parent=11 // pred_fallthru
        _
      // Predicated region
      $region21: #{conv3_forward.1} parent=11 // pred_check
        %p190 = pneg %p101
      $region22: #{conv3_forward.1} parent=11 // pred_check_branch
        %192 = sbr.rel (%p190) target = $region24
      $region23: #{conv3_forward.1} parent=11 // pred_region
        _
      $region24: #{conv3_forward.1} parent=11 // pred_fallthru
        _
      // Predicated region
      $region25: #{conv3_forward.1} parent=11 // pred_check
        %p193 = pneg %p122
      $region26: #{conv3_forward.1} parent=11 // pred_check_branch
        %195 = sbr.rel (%p193) target = $region28
      $region27: #{conv3_forward.1} parent=11 // pred_region
        _
      $region28: #{conv3_forward.1} parent=11 // pred_fallthru
        _
      // Predicated region
      $region29: #{conv3_forward.1} parent=11 // pred_check
        %p196 = pneg %p143
      $region30: #{conv3_forward.1} parent=11 // pred_check_branch
        %198 = sbr.rel (%p196) target = $region32
      $region31: #{conv3_forward.1} parent=11 // pred_region
        _
      $region32: #{conv3_forward.1} parent=11 // pred_fallthru
        _
    $region12: #{conv3_forward.1} parent=5 // pred_fallthru
      _
    %p199 = scmp.lt.s32.totalorder %s12, 2
    // Predicated region
    $region33: #{conv3_forward.1} parent=5 // pred_check
      %p200 = pneg %p199
    $region34: #{conv3_forward.1} parent=5 // pred_check_branch
      %202 = sbr.rel (%p200) target = $region36
    $region35: #{conv3_forward.1} parent=5 // pred_region
      // Predicated region
      $region37: #{conv3_forward.1} parent=35 // pred_check
        %p203 = pneg %p32
      $region38: #{conv3_forward.1} parent=35 // pred_check_branch
        %205 = sbr.rel (%p203) target = $region40
      $region39: #{conv3_forward.1} parent=35 // pred_region
        %p206 = scmp.lt.s32.totalorder %s12, 1
        %s207 = scalar_select %p206, %s12, 1
        %s208 = smul.addr %s207, 3
        %s209 = smul.addr %s208, 8
        %s210 = scalar_lea.vmem %s0, %s209
      $region40: #{conv3_forward.1} parent=35 // pred_fallthru
        _
    $region36: #{conv3_forward.1} parent=5 // pred_fallthru
      _
    %p211 = scmp.le.s32.totalorder 1, %s12
    %p212 = scmp.lt.s32.totalorder %s12, 3
    %p213 = pnand %p211, %p212
    %p214 = pneg %p213
    // Predicated region
    $region41: #{conv3_forward.1} parent=5 // pred_check
      _
    $region42: #{conv3_forward.1} parent=5 // pred_check_branch
      %216 = sbr.rel (%p213) target = $region44
    $region43: #{conv3_forward.1} parent=5 // pred_region
      %s217 = ssub.s32 %s12, 1
      %p218 = scmp.lt.s32.totalorder %s17, 1
      %s219 = scalar_select %p218, %s17, 1
      %s220 = smul.addr %s219, 3
      %s221 = smul.addr %s220, 8
      %s222 = scalar_lea.vmem %s0, %s221
      %p223 = pneg %p38
      %p224 = pneg %p35
      %p225 = pneg %p59
      %p226 = pneg %p56
      %p227 = pneg %p80
      %p228 = pneg %p77
      %p229 = pneg %p101
      %p230 = pneg %p98
      %p231 = pneg %p122
      %p232 = pneg %p119
      %p233 = pneg %p143
      %p234 = pneg %p140
      %p235 = pneg %p169
      %p236 = pneg %p166
      %p237 = scmp.lt.s32.totalorder %s17, 1
      %s238 = scalar_select %p237, %s17, 1
      %s239 = smul.addr %s238, 2
      %s240 = smul.addr %s239, 8
      %s241 = scalar_lea.vmem %s6, %s240
      %p242 = scmp.lt.s32.totalorder %s17, 1
      %s243 = scalar_select %p242, %s17, 1
      %s244 = smul.addr %s243, 3
      %s245 = smul.addr %s244, 8
      %s246 = scalar_lea.vmem %s0, %s245
      %p247 = scmp.lt.s32.totalorder %s17, 1
      %s248 = scalar_select %p247, %s17, 1
      %s249 = smul.addr %s248, 2
      %s250 = smul.addr %s249, 8
      %s251 = scalar_lea.vmem %s6, %s250
      %v252 = vld [vmem:[%s1] sm:$0x3]
      %s253 = scalar_lea.vmem %s1, 2
      %v254 = vld [vmem:[%s253] sm:$0x3]
      %v255 = vld [vmem:[%s246] sm:$0xff]
      %v256 = vld [vmem:[%s246 + $0x8] sm:$0xff]
      %v258 = vlaneseq
      %v259 = vshrl.u32 %v258, 7
      %v260 = vsub.s32 0, %v259
      %v261 = vrot.slane %v252, %v260
      %v262 = vlaneseq
      %v263 = vshrl.u32 %v262, 7
      %v264 = vsub.s32 1, %v263
      %v265 = vrot.slane %v252, %v264
      %v268 = vmul.f32 %v255, %v261
      %v269 = vmul.f32 %v256, %v265
      %v270 = vld [vmem:[%s246 + $0x10] sm:$0xff]
      %v272 = vlaneseq
      %v273 = vshrl.u32 %v272, 7
      %v274 = vsub.s32 0, %v273
      %v275 = vrot.slane %v254, %v274
      %v276 = vlaneseq
      %v277 = vshrl.u32 %v276, 7
      %v278 = vsub.s32 1, %v277
      %v279 = vrot.slane %v254, %v278
      %280 = vrot.lane.b32.xlu0 %v275, 2
      %v281 = vpop.permute.xlu0 %280
      %282 = vrot.lane.b32.xlu0 %v279, 2
      %v283 = vpop.permute.xlu0 %282
      %vm284 = vcmask 15360
      %v285 = vsel %vm284, %v281, %v283
      %v289 = vmul.f32 %v255, %v281
      %v290 = vmul.f32 %v256, %v285
      %v291 = vmul.f32 %v270, %v283
      %292 = vrot.lane.b32.xlu0 %v261, 16
      %v293 = vpop.permute.xlu0 %292
      %294 = vrot.lane.b32.xlu0 %v265, 16
      %v295 = vpop.permute.xlu0 %294
      %vm296 = vcmask 130048
      %v297 = vsel %vm296, %v293, %v295
      %v301 = vmul.f32 %v255, %v293
      %v302 = vmul.f32 %v256, %v297
      %v303 = vmul.f32 %v270, %v295
      %304 = vrot.lane.b32.xlu0 %v275, 18
      %v305 = vpop.permute.xlu0 %304
      %306 = vrot.lane.b32.xlu0 %v279, 18
      %v307 = vpop.permute.xlu0 %306
      %vm308 = vcmask 146432
      %v309 = vsel %vm308, %v305, %v307
      %v313 = vmul.f32 %v255, %v305
      %v314 = vmul.f32 %v256, %v309
      %v315 = vmul.f32 %v270, %v307
      %316 = vrot.lane.b32.xlu0 %v261, 32
      %v317 = vpop.permute.xlu0 %316
      %318 = vrot.lane.b32.xlu0 %v265, 32
      %v319 = vpop.permute.xlu0 %318
      %vm320 = vcmask 261120
      %v321 = vsel %vm320, %v317, %v319
      %v325 = vmul.f32 %v255, %v317
      %v326 = vmul.f32 %v256, %v321
      %v327 = vmul.f32 %v270, %v319
      %328 = vrot.lane.b32.xlu0 %v275, 34
      %v329 = vpop.permute.xlu0 %328
      %330 = vrot.lane.b32.xlu0 %v279, 34
      %v331 = vpop.permute.xlu0 %330
      %vm332 = vcmask 277504
      %v333 = vsel %vm332, %v329, %v331
      %v337 = vmul.f32 %v255, %v329
      %v338 = vmul.f32 %v256, %v333
      %v339 = vmul.f32 %v270, %v331
      %343 = vrot.lane.b32.xlu0 %v255, 127
      %v344 = vpop.permute.xlu0 %343
      %345 = vrot.lane.b32.xlu0 %v256, 127
      %v346 = vpop.permute.xlu0 %345
      %347 = vrot.lane.b32.xlu0 %v270, 127
      %v348 = vpop.permute.xlu0 %347
      %vm349 = vcmask 1039360
      %v350 = vsel %vm349, %v344, %v346
      %v351 = vsel %vm349, %v346, %v348
      %357 = vrot.lane.b32.xlu0 %v289, 126
      %v358 = vpop.permute.xlu0 %357
      %359 = vrot.lane.b32.xlu0 %v290, 126
      %v360 = vpop.permute.xlu0 %359
      %361 = vrot.lane.b32.xlu0 %v291, 126
      %v362 = vpop.permute.xlu0 %361
      %vm363 = vcmask 1031168
      %v364 = vsel %vm363, %v358, %v360
      %v365 = vsel %vm363, %v360, %v362
      %371 = vrot.lane.b32.xlu0 %v301, 112
      %v372 = vpop.permute.xlu0 %371
      %373 = vrot.lane.b32.xlu0 %v302, 112
      %v374 = vpop.permute.xlu0 %373
      %375 = vrot.lane.b32.xlu0 %v303, 112
      %v376 = vpop.permute.xlu0 %375
      %vm377 = vcmask 916480
      %v378 = vsel %vm377, %v372, %v374
      %v379 = vsel %vm377, %v374, %v376
      %382 = vrot.lane.b32.xlu0 %v255, 111
      %v383 = vpop.permute.xlu0 %382
      %384 = vrot.lane.b32.xlu0 %v256, 111
      %v385 = vpop.permute.xlu0 %384
      %386 = vrot.lane.b32.xlu0 %v270, 111
      %v387 = vpop.permute.xlu0 %386
      %vm388 = vcmask 908288
      %v389 = vsel %vm388, %v383, %v385
      %v390 = vsel %vm388, %v385, %v387
      %396 = vrot.lane.b32.xlu0 %v313, 110
      %v397 = vpop.permute.xlu0 %396
      %398 = vrot.lane.b32.xlu0 %v314, 110
      %v399 = vpop.permute.xlu0 %398
      %400 = vrot.lane.b32.xlu0 %v315, 110
      %v401 = vpop.permute.xlu0 %400
      %vm402 = vcmask 900096
      %v403 = vsel %vm402, %v397, %v399
      %v404 = vsel %vm402, %v399, %v401
      %410 = vrot.lane.b32.xlu0 %v325, 96
      %v411 = vpop.permute.xlu0 %410
      %412 = vrot.lane.b32.xlu0 %v326, 96
      %v413 = vpop.permute.xlu0 %412
      %414 = vrot.lane.b32.xlu0 %v327, 96
      %v415 = vpop.permute.xlu0 %414
      %vm416 = vcmask 785408
      %v417 = vsel %vm416, %v411, %v413
      %v418 = vsel %vm416, %v413, %v415
      %421 = vrot.lane.b32.xlu0 %v255, 95
      %v422 = vpop.permute.xlu0 %421
      %423 = vrot.lane.b32.xlu0 %v256, 95
      %v424 = vpop.permute.xlu0 %423
      %425 = vrot.lane.b32.xlu0 %v270, 95
      %v426 = vpop.permute.xlu0 %425
      %vm427 = vcmask 777216
      %v428 = vsel %vm427, %v422, %v424
      %v429 = vsel %vm427, %v424, %v426
      %435 = vrot.lane.b32.xlu0 %v337, 94
      %v436 = vpop.permute.xlu0 %435
      %437 = vrot.lane.b32.xlu0 %v338, 94
      %v438 = vpop.permute.xlu0 %437
      %439 = vrot.lane.b32.xlu0 %v339, 94
      %v440 = vpop.permute.xlu0 %439
      %vm441 = vcmask 769024
      %v442 = vsel %vm441, %v436, %v438
      %v443 = vsel %vm441, %v438, %v440
      %v446 = vld [vmem:[%s2] sm:$0xff]
      %v447 = vld [vmem:[%s3] sm:$0xff]
      %449 = vset.pattern.permute.xlu0 0
      %450 = vperm.xlu0 %449, %v447
      %v451 = vpop.permute.xlu0 %450
      %vm453 = vcmask 588800
      %v455 = vsel %vm453, %v446, 0
      %457 = vmatprep.subr.mxu0 0.0
      %458 = vmatpush1.msra.mxu0 0.0
      %459 = vmatprep.subr.mxu0 0.0
      %460 = vmatpush1.msra.mxu0 0.0
      %461 = vmatprep.subr.mxu0 0.0
      %462 = vmatpush1.msra.mxu0 0.0
      %463 = vmatprep.subr.mxu0 0.0
      %464 = vmatpush1.msra.mxu0 0.0
      %465 = vmatprep.subr.mxu0 0.0
      %466 = vmatpush1.msra.mxu0 0.0
      %467 = vmatprep.subr.mxu0 0.0
      %468 = vmatpush1.msra.mxu0 0.0
      %469 = vmatprep.subr.mxu0 0.0
      %470 = vmatpush1.msra.mxu0 0.0
      %471 = vmatprep.subr.mxu0 %v443
      %472 = vmatpush1.msra.mxu0 %v442
      %473 = vmatprep.subr.mxu0 %v429
      %474 = vmatpush1.msra.mxu0 %v428
      %475 = vmatprep.subr.mxu0 %v418
      %476 = vmatpush1.msra.mxu0 %v417
      %477 = vmatprep.subr.mxu0 %v404
      %478 = vmatpush1.msra.mxu0 %v403
      %479 = vmatprep.subr.mxu0 %v390
      %480 = vmatpush1.msra.mxu0 %v389
      %481 = vmatprep.subr.mxu0 %v379
      %482 = vmatpush1.msra.mxu0 %v378
      %483 = vmatprep.subr.mxu0 %v365
      %484 = vmatpush1.msra.mxu0 %v364
      %485 = vmatprep.subr.mxu0 %v351
      %486 = vmatpush1.msra.mxu0 %v350
      %487 = vmatprep.subr.mxu0 %v269
      %488 = vmatpush1.msra.mxu0 %v268
      %489 = vmatprep.subr.mxu0 0.0
      %490 = vmatpush2.msra.mxu0 0.0
      %491 = vmatprep.subr.mxu0 0.0
      %492 = vmatpush2.msra.mxu0 0.0
      %493 = vmatprep.subr.mxu0 0.0
      %494 = vmatpush2.msra.mxu0 0.0
      %495 = vmatprep.subr.mxu0 0.0
      %496 = vmatpush2.msra.mxu0 0.0
      %497 = vmatprep.subr.mxu0 0.0
      %498 = vmatpush2.msra.mxu0 0.0
      %499 = vmatprep.subr.mxu0 0.0
      %500 = vmatpush2.msra.mxu0 0.0
      %501 = vmatprep.subr.mxu0 0.0
      %502 = vmatpush2.msra.mxu0 0.0
      %503 = vmatprep.subr.mxu0 0.0
      %504 = vmatpush2.msra.mxu0 0.0
      %505 = vmatprep.subr.mxu0 0.0
      %506 = vmatpush2.msra.mxu0 0.0
      %507 = vmatprep.subr.mxu0 0.0
      %508 = vmatpush2.msra.mxu0 0.0
      %509 = vmatprep.subr.mxu0 0.0
      %510 = vmatpush2.msra.mxu0 0.0
      %511 = vmatprep.subr.mxu0 0.0
      %512 = vmatpush2.msra.mxu0 0.0
      %513 = vmatprep.subr.mxu0 0.0
      %514 = vmatpush2.msra.mxu0 0.0
      %515 = vmatprep.subr.mxu0 0.0
      %516 = vmatpush2.msra.mxu0 0.0
      %517 = vmatprep.subr.mxu0 0.0
      %518 = vmatpush2.msra.mxu0 0.0
      %519 = vmatprep.subr.mxu0 0.0
      %520 = vmatpush2.msra.mxu0 0.0
      %521 = vmatprep.mubr.f32.mxu0 0.0
      %522 = vmatmul.mubr.f32.gmra.mxu0 %v455
      %v523 = vpop.f32.mrf.mxu0
      %v524 = vadd.f32 %v451, %v523
      %v525 = vpop.f32.mrf.mxu0
      %v526 = vadd.f32 %v451, %v525
      %527 = vdwg.mxu0
      %vm528 = vcmask 138240
      %529 = vst.msk [vmem:[#allocation2] sm:$0xff] %vm528, 0.0
      %vm530 = vcmask 277640
      %531 = vst.msk [vmem:[#allocation2 + $0x10] sm:$0xff] %vm530, 0.0
      %534 = vrot.lane.b32.xlu0 %v524, 17
      %v535 = vpop.permute.xlu0 %534
      %536 = vrot.lane.b32.xlu0 %v526, 17
      %v537 = vpop.permute.xlu0 %536
      %v538 = vsel %vm528, %v535, %v537
      %vm542 = vcmask 1047688
      %543 = vst.msk [vmem:[#allocation2] sm:$0xff] %vm542, %v535
      %544 = vst [vmem:[#allocation2 + $0x8] sm:$0xff] %v538
      %545 = vst.msk [vmem:[#allocation2 + $0x10] sm:$0xff] %vm528, %v537
      %v546 = vld [vmem:[#allocation2] sm:$0xff]
      %v547 = vld [vmem:[#allocation2 + $0x8] sm:$0xff]
      %v548 = vmul.f32 %v546, %v261
      %v549 = vmul.f32 %v547, %v265
      %v550 = vld [vmem:[#allocation2 + $0x10] sm:$0xff]
      %v551 = vmul.f32 %v546, %v281
      %v552 = vmul.f32 %v547, %v285
      %v553 = vmul.f32 %v550, %v283
      %v554 = vmul.f32 %v546, %v293
      %v555 = vmul.f32 %v547, %v297
      %v556 = vmul.f32 %v550, %v295
      %v557 = vmul.f32 %v546, %v305
      %v558 = vmul.f32 %v547, %v309
      %v559 = vmul.f32 %v550, %v307
      %v560 = vmul.f32 %v546, %v317
      %v561 = vmul.f32 %v547, %v321
      %v562 = vmul.f32 %v550, %v319
      %v563 = vmul.f32 %v546, %v329
      %v564 = vmul.f32 %v547, %v333
      %v565 = vmul.f32 %v550, %v331
      %569 = vrot.lane.b32.xlu0 %v546, 127
      %v570 = vpop.permute.xlu0 %569
      %571 = vrot.lane.b32.xlu0 %v547, 127
      %v572 = vpop.permute.xlu0 %571
      %573 = vrot.lane.b32.xlu0 %v550, 127
      %v574 = vpop.permute.xlu0 %573
      %v575 = vsel %vm349, %v570, %v572
      %v576 = vsel %vm349, %v572, %v574
      %582 = vrot.lane.b32.xlu0 %v551, 126
      %v583 = vpop.permute.xlu0 %582
      %584 = vrot.lane.b32.xlu0 %v552, 126
      %v585 = vpop.permute.xlu0 %584
      %586 = vrot.lane.b32.xlu0 %v553, 126
      %v587 = vpop.permute.xlu0 %586
      %v588 = vsel %vm363, %v583, %v585
      %v589 = vsel %vm363, %v585, %v587
      %595 = vrot.lane.b32.xlu0 %v554, 112
      %v596 = vpop.permute.xlu0 %595
      %597 = vrot.lane.b32.xlu0 %v555, 112
      %v598 = vpop.permute.xlu0 %597
      %599 = vrot.lane.b32.xlu0 %v556, 112
      %v600 = vpop.permute.xlu0 %599
      %v601 = vsel %vm377, %v596, %v598
      %v602 = vsel %vm377, %v598, %v600
      %605 = vrot.lane.b32.xlu0 %v546, 111
      %v606 = vpop.permute.xlu0 %605
      %607 = vrot.lane.b32.xlu0 %v547, 111
      %v608 = vpop.permute.xlu0 %607
      %609 = vrot.lane.b32.xlu0 %v550, 111
      %v610 = vpop.permute.xlu0 %609
      %v611 = vsel %vm388, %v606, %v608
      %v612 = vsel %vm388, %v608, %v610
      %618 = vrot.lane.b32.xlu0 %v557, 110
      %v619 = vpop.permute.xlu0 %618
      %620 = vrot.lane.b32.xlu0 %v558, 110
      %v621 = vpop.permute.xlu0 %620
      %622 = vrot.lane.b32.xlu0 %v559, 110
      %v623 = vpop.permute.xlu0 %622
      %v624 = vsel %vm402, %v619, %v621
      %v625 = vsel %vm402, %v621, %v623
      %631 = vrot.lane.b32.xlu0 %v560, 96
      %v632 = vpop.permute.xlu0 %631
      %633 = vrot.lane.b32.xlu0 %v561, 96
      %v634 = vpop.permute.xlu0 %633
      %635 = vrot.lane.b32.xlu0 %v562, 96
      %v636 = vpop.permute.xlu0 %635
      %v637 = vsel %vm416, %v632, %v634
      %v638 = vsel %vm416, %v634, %v636
      %641 = vrot.lane.b32.xlu0 %v546, 95
      %v642 = vpop.permute.xlu0 %641
      %643 = vrot.lane.b32.xlu0 %v547, 95
      %v644 = vpop.permute.xlu0 %643
      %645 = vrot.lane.b32.xlu0 %v550, 95
      %v646 = vpop.permute.xlu0 %645
      %v647 = vsel %vm427, %v642, %v644
      %v648 = vsel %vm427, %v644, %v646
      %654 = vrot.lane.b32.xlu0 %v563, 94
      %v655 = vpop.permute.xlu0 %654
      %656 = vrot.lane.b32.xlu0 %v564, 94
      %v657 = vpop.permute.xlu0 %656
      %658 = vrot.lane.b32.xlu0 %v565, 94
      %v659 = vpop.permute.xlu0 %658
      %v660 = vsel %vm441, %v655, %v657
      %v661 = vsel %vm441, %v657, %v659
      %v664 = vld [vmem:[%s4] sm:$0xff]
      %v665 = vld [vmem:[%s5] sm:$0xff]
      %667 = vset.pattern.permute.xlu0 0
      %668 = vperm.xlu0 %667, %v665
      %v669 = vpop.permute.xlu0 %668
      %v672 = vsel %vm453, %v664, 0
      %674 = vmatprep.subr.mxu0 0.0
      %675 = vmatpush1.msra.mxu0 0.0
      %676 = vmatprep.subr.mxu0 0.0
      %677 = vmatpush1.msra.mxu0 0.0
      %678 = vmatprep.subr.mxu0 0.0
      %679 = vmatpush1.msra.mxu0 0.0
      %680 = vmatprep.subr.mxu0 0.0
      %681 = vmatpush1.msra.mxu0 0.0
      %682 = vmatprep.subr.mxu0 0.0
      %683 = vmatpush1.msra.mxu0 0.0
      %684 = vmatprep.subr.mxu0 0.0
      %685 = vmatpush1.msra.mxu0 0.0
      %686 = vmatprep.subr.mxu0 0.0
      %687 = vmatpush1.msra.mxu0 0.0
      %688 = vmatprep.subr.mxu0 %v661
      %689 = vmatpush1.msra.mxu0 %v660
      %690 = vmatprep.subr.mxu0 %v648
      %691 = vmatpush1.msra.mxu0 %v647
      %692 = vmatprep.subr.mxu0 %v638
      %693 = vmatpush1.msra.mxu0 %v637
      %694 = vmatprep.subr.mxu0 %v625
      %695 = vmatpush1.msra.mxu0 %v624
      %696 = vmatprep.subr.mxu0 %v612
      %697 = vmatpush1.msra.mxu0 %v611
      %698 = vmatprep.subr.mxu0 %v602
      %699 = vmatpush1.msra.mxu0 %v601
      %700 = vmatprep.subr.mxu0 %v589
      %701 = vmatpush1.msra.mxu0 %v588
      %702 = vmatprep.subr.mxu0 %v576
      %703 = vmatpush1.msra.mxu0 %v575
      %704 = vmatprep.subr.mxu0 %v549
      %705 = vmatpush1.msra.mxu0 %v548
      %706 = vmatprep.subr.mxu0 0.0
      %707 = vmatpush2.msra.mxu0 0.0
      %708 = vmatprep.subr.mxu0 0.0
      %709 = vmatpush2.msra.mxu0 0.0
      %710 = vmatprep.subr.mxu0 0.0
      %711 = vmatpush2.msra.mxu0 0.0
      %712 = vmatprep.subr.mxu0 0.0
      %713 = vmatpush2.msra.mxu0 0.0
      %714 = vmatprep.subr.mxu0 0.0
      %715 = vmatpush2.msra.mxu0 0.0
      %716 = vmatprep.subr.mxu0 0.0
      %717 = vmatpush2.msra.mxu0 0.0
      %718 = vmatprep.subr.mxu0 0.0
      %719 = vmatpush2.msra.mxu0 0.0
      %720 = vmatprep.subr.mxu0 0.0
      %721 = vmatpush2.msra.mxu0 0.0
      %722 = vmatprep.subr.mxu0 0.0
      %723 = vmatpush2.msra.mxu0 0.0
      %724 = vmatprep.subr.mxu0 0.0
      %725 = vmatpush2.msra.mxu0 0.0
      %726 = vmatprep.subr.mxu0 0.0
      %727 = vmatpush2.msra.mxu0 0.0
      %728 = vmatprep.subr.mxu0 0.0
      %729 = vmatpush2.msra.mxu0 0.0
      %730 = vmatprep.subr.mxu0 0.0
      %731 = vmatpush2.msra.mxu0 0.0
      %732 = vmatprep.subr.mxu0 0.0
      %733 = vmatpush2.msra.mxu0 0.0
      %734 = vmatprep.subr.mxu0 0.0
      %735 = vmatpush2.msra.mxu0 0.0
      %736 = vmatprep.subr.mxu0 0.0
      %737 = vmatpush2.msra.mxu0 0.0
      %738 = vmatprep.mubr.f32.mxu0 0.0
      %739 = vmatmul.mubr.f32.gmra.mxu0 %v672
      %v740 = vpop.f32.mrf.mxu0
      %v741 = vadd.f32 %v669, %v740
      %v742 = vpop.f32.mrf.mxu0
      %v743 = vadd.f32 %v669, %v742
      %744 = vdwg.mxu0
      %v745 = vmax.f32 %v741, 0.0
      %v746 = vmax.f32 %v743, 0.0
      %747 = vst [vmem:[%s251] sm:$0xff] %v745
      %748 = vst [vmem:[%s251 + $0x8] sm:$0xff] %v746
      %p749 = scmp.lt.s32.totalorder %s17, 1
      %s750 = scalar_select %p749, %s17, 1
      %s751 = smul.addr %s750, 2
      %s752 = smul.addr %s751, 8
      %s753 = scalar_lea.vmem %s6, %s752
      // Predicated region
      $region45: #{conv3_forward.1} parent=43 // pred_check
        %p754 = pneg %p166
      $region46: #{conv3_forward.1} parent=43 // pred_check_branch
        %756 = sbr.rel (%p754) target = $region48
      $region47: #{conv3_forward.1} parent=43 // pred_region
        _
      $region48: #{conv3_forward.1} parent=43 // pred_fallthru
        _
    $region44: #{conv3_forward.1} parent=5 // pred_fallthru
      _
    %p757 = scmp.le.s32.totalorder 2, %s12
    // Predicated region
    $region49: #{conv3_forward.1} parent=5 // pred_check
      %p758 = pneg %p757
    $region50: #{conv3_forward.1} parent=5 // pred_check_branch
      %760 = sbr.rel (%p758) target = $region52
    $region51: #{conv3_forward.1} parent=5 // pred_region
      %s761 = ssub.s32 %s12, 2
      // Predicated region
      $region53: #{conv3_forward.1} parent=51 // pred_check
        %p762 = pneg %p172
      $region54: #{conv3_forward.1} parent=51 // pred_check_branch
        %764 = sbr.rel (%p762) target = $region56
      $region55: #{conv3_forward.1} parent=51 // pred_region
        %p765 = scmp.lt.s32.totalorder %s18, 1
        %s766 = scalar_select %p765, %s18, 1
        %s767 = smul.addr %s766, 2
        %s768 = smul.addr %s767, 8
        %s769 = scalar_lea.vmem %s6, %s768
      $region56: #{conv3_forward.1} parent=51 // pred_fallthru
        _
    $region52: #{conv3_forward.1} parent=5 // pred_fallthru
      _
  $region6: #{conv3_forward.1} parent=0 // loop_footer
    %s16 = sadd.s32 1, %s12
  $region7: #{conv3_forward.1} parent=0 // loop_footer_branch
    %11 = sbr.rel target = $region3
  $region8: #{conv3_forward.1} parent=0 // loop_exit
    _

</llo_original>
